<compile_context>
chip_gen: v5e
topology: v5e:2x2
jax: 0.10.0
libtpu: 0.0.40
codegen_flags: <defaults>
</compile_context>

<pallas_src>
from functools import partial

import jax
import jax.numpy as jnp
from jax import lax
from jax.experimental import pallas as pl
from jax.experimental.pallas import tpu as pltpu


# ----------------------------- Pallas kernels ------------------------------

def _hidden(xm_ref, wh_ref, bh_ref):
    """ReLU([X | M] @ [Wl ; Wh] + (bl + bh)) -> [N, H] in one MXU pass."""
    return jnp.maximum(
        jnp.dot(xm_ref[...], wh_ref[...], preferred_element_type=jnp.float32)
        + bh_ref[...],
        0.0)


def nhp_mean_kernel(xm_ref, mask_ref, wh_ref, bh_ref, ws_ref, bs_ref, out_ref):
    h = _hidden(xm_ref, wh_ref, bh_ref)                            # [N, H]
    mask = mask_ref[...]                                           # [N, K]
    # Un-normalized hyperedge sums: mask^T @ h (contract the node axis).
    agg = lax.dot_general(mask, h, (((0,), (0,)), ((), ())),
                          preferred_element_type=jnp.float32)      # [K, H]
    # Lane-dense logits: contract H between ws [1,H] and agg [K,H] -> [1, K].
    raw = lax.dot_general(ws_ref[...], agg, (((1,), (1,)), ((), ())),
                          preferred_element_type=jnp.float32)      # [1, K]
    col_sums = jnp.sum(mask, axis=0, keepdims=True)                # [1, K]
    # EUP reciprocal (separate VLIW slot); guard empty hyperlink columns.
    inv = jnp.where(col_sums > 0.0,
                    pl.reciprocal(col_sums, approx=True), 0.0)
    out_ref[...] = jax.nn.sigmoid(raw * inv + bs_ref[...])         # [1, K]


def nhp_maxmin_kernel(xm_ref, mask_ref, wh_ref, bh_ref, ws_ref, bs_ref, out_ref):
    h = _hidden(xm_ref, wh_ref, bh_ref)                            # [N, H]
    mask = mask_ref[...]                                           # [N, K]
    member = mask[:, :, None] == 1.0                               # [N, K, 1]
    h3 = h[:, None, :]                                             # [N, 1, H]
    big = jnp.float32(3.0e38)
    maxf = jnp.max(jnp.where(member, h3, -big), axis=0)            # [K, H]
    minf = jnp.min(jnp.where(member, h3, big), axis=0)             # [K, H]
    # Empty hyperlink columns (maxf stays at -big) produce 0 instead of
    # NaN/inf (the PyTorch reference would give -inf rows there).
    agg = jnp.where(maxf > -big, maxf - minf, 0.0)                 # [K, H]
    raw = lax.dot_general(ws_ref[...], agg, (((1,), (1,)), ((), ())),
                          preferred_element_type=jnp.float32)      # [1, K]
    out_ref[...] = jax.nn.sigmoid(raw + bs_ref[...])               # [1, K]


# ------------------------------ fused forward -------------------------------

@partial(jax.jit, static_argnames=("g_func",))
def nhp_forward(params, pos_features, pos_matrix, neg_features, neg_matrix,
                mask, *, g_func):
    N, K = mask.shape
    F2, H = params["w_hidden"].shape

    # Stack pos/neg on a leading branch axis; concat X|M so the kernel does a
    # single hidden matmul per branch.
    xm = jnp.stack(
        [jnp.concatenate([pos_features, pos_matrix], axis=1),
         jnp.concatenate([neg_features, neg_matrix], axis=1)],
        axis=0)                                                    # [2, N, 2F]

    if g_func == "mean":
        kernel = nhp_mean_kernel
    elif g_func == "maxmin":
        kernel = nhp_maxmin_kernel
    else:
        raise ValueError("invalid scoring function")

    scores = pl.pallas_call(
        kernel,
        out_shape=jax.ShapeDtypeStruct((2, 1, K), jnp.float32),
        grid_spec=pltpu.PrefetchScalarGridSpec(
            num_scalar_prefetch=0,
            grid=(2,),                                             # pos / neg
            in_specs=[
                pl.BlockSpec((None, N, F2), lambda b: (b, 0, 0)),  # per-branch
                pl.BlockSpec((N, K), lambda b: (0, 0)),            # shared mask
                pl.BlockSpec((F2, H), lambda b: (0, 0)),           # fused W
                pl.BlockSpec((1, H), lambda b: (0, 0)),            # fused bias
                pl.BlockSpec((1, H), lambda b: (0, 0)),            # score W row
                pl.BlockSpec((1, 1), lambda b: (0, 0)),            # score bias
            ],
            out_specs=pl.BlockSpec((None, 1, K), lambda b: (b, 0, 0)),
        ),
        compiler_params=pltpu.CompilerParams(
            dimension_semantics=("parallel",)),   # shards branches on v7x 2xTC
    )(xm, mask, params["w_hidden"], params["b_hidden"],
      params["w_score_row"], params["b_score"])

    pos_score = scores[0].reshape(K, 1)
    neg_score = scores[1].reshape(K, 1)
    return pos_score, neg_score


# ------------------------------ Module wrapper ------------------------------

class NHP:
    """JAX/Pallas port of the PyTorch NHP module (forward only)."""

    def __init__(self, feature_size, hidden_size, g_func, key):
        if g_func not in ("mean", "maxmin"):
            raise ValueError("invalid scoring function")
        self.g_func = g_func
        self.hidden_size = hidden_size
        k1, k2, k3, k4, k5, k6 = jax.random.split(key, 6)

        def uinit(k, shape, fan_in):
            bound = 1.0 / jnp.sqrt(jnp.float32(fan_in))
            return jax.random.uniform(k, shape, jnp.float32, -bound, bound)

        # Stored pre-transposed vs. PyTorch: [F, H].
        self.w_loop = uinit(k1, (feature_size, hidden_size), feature_size)
        self.b_loop = uinit(k2, (1, hidden_size), feature_size)
        self.w_hyper = uinit(k3, (feature_size, hidden_size), feature_size)
        self.b_hyper = uinit(k4, (1, hidden_size), feature_size)
        self.w_score = uinit(k5, (hidden_size, 1), hidden_size)
        self.b_score = uinit(k6, (1, 1), hidden_size)

        # Fused parameters consumed by the kernel.
        self.params = {
            "w_hidden": jnp.concatenate([self.w_loop, self.w_hyper], axis=0),
            "b_hidden": self.b_loop + self.b_hyper,
            "w_score_row": self.w_score.T,
            "b_score": self.b_score,
        }
        # TODO(synk): at realistic sizes (N in the thousands, H>=128), add a
        # grid over N with bf16 matmul inputs and VMEM-budgeted tiles.

    def forward(self, data):
        return nhp_forward(self.params,
                           data['pos_features'][0], data['pos_matrix'][0],
                           data['neg_features'][0], data['neg_matrix'][0],
                           data['batch_mask'][0], g_func=self.g_func)


# --------------------------- pure-JAX reference -----------------------------

def _ref_branch(feats, mat, mask, p, g_func):
    loop = feats @ p['w_loop'] + p['b_loop']
    gcn = mat @ p['w_hyper'] + p['b_hyper']
    h = jnp.maximum(loop + gcn, 0.0)
    if g_func == 'mean':
        col_sums = jnp.sum(mask, axis=0)
        norm = mask / col_sums
        agg = norm.T @ h
    else:  # maxmin
        member = mask[:, :, None] == 1.0                      # [N, K, 1]
        f3 = h[:, None, :]                                    # [N, 1, H]
        maxf = jnp.max(jnp.where(member, f3, -jnp.inf), axis=0)
        minf = jnp.min(jnp.where(member, f3, jnp.inf), axis=0)
        agg = maxf - minf
    return jax.nn.sigmoid(agg @ p['w_score'] + p['b_score'])


# ---------------------------------- main -------------------------------------

if __name__ == "__main__":
    N, F, H, K = 8, 16, 32, 4   # nodes, feature_size, hidden_size, hyperlinks

    key = jax.random.PRNGKey(0)
    kp, kd = jax.random.split(key)
    k_pf, k_pm, k_nf, k_nm, k_mask = jax.random.split(kd, 5)

    pos_features = jax.random.normal(k_pf, (N, F), jnp.float32)
    pos_matrix = jax.random.normal(k_pm, (N, F), jnp.float32)
    neg_features = jax.random.normal(k_nf, (N, F), jnp.float32)
    neg_matrix = jax.random.normal(k_nm, (N, F), jnp.float32)

    # Binary incidence mask; ensure every hyperlink has at least one member
    # (matches the reference's non-empty-column assumption).
    mask = jax.random.bernoulli(k_mask, 0.5, (N, K)).astype(jnp.float32)
    for k in range(K):
        mask = mask.at[k % N, k].set(1.0)

    # Mimic the PyTorch dict-of-batched-tensors interface: data[...][0]
    data = {
        'pos_features': pos_features[None],
        'pos_matrix': pos_matrix[None],
        'neg_features': neg_features[None],
        'neg_matrix': neg_matrix[None],
        'batch_mask': mask[None],
    }

    all_ok = True
    for g_func in ('mean', 'maxmin'):
        model = NHP(F, H, g_func, kp)
        pos_score, neg_score = model.forward(data)
        jax.block_until_ready((pos_score, neg_score))

        params = dict(w_loop=model.w_loop, b_loop=model.b_loop,
                      w_hyper=model.w_hyper, b_hyper=model.b_hyper,
                      w_score=model.w_score, b_score=model.b_score)
        ref_pos = _ref_branch(pos_features, pos_matrix, mask, params, g_func)
        ref_neg = _ref_branch(neg_features, neg_matrix, mask, params, g_func)

        ok = (jnp.allclose(pos_score, ref_pos, atol=2e-3, rtol=2e-3) and
              jnp.allclose(neg_score, ref_neg, atol=2e-3, rtol=2e-3))
        all_ok = all_ok and bool(ok)

    if all_ok:
        print("KERNEL_OK")
    else:
        print("MISMATCH")
</pallas_src>

<mosaic_0001>
module attributes {stable_mosaic.version = 11 : i64} {
  func.func @nhp_mean_kernel(%arg0: i32, %arg1: memref<1x8x32xf32, #tpu.memory_space<vmem>>, %arg2: memref<8x4xf32, #tpu.memory_space<vmem>>, %arg3: memref<32x32xf32, #tpu.memory_space<vmem>>, %arg4: memref<1x32xf32, #tpu.memory_space<vmem>>, %arg5: memref<1x32xf32, #tpu.memory_space<vmem>>, %arg6: memref<1x1xf32, #tpu.memory_space<vmem>>, %arg7: memref<1x1x4xf32, #tpu.memory_space<vmem>>) attributes {dimension_semantics = [#tpu.dimension_semantics<parallel>], iteration_bounds = array<i64: 2>, scalar_prefetch = 0 : i64, scratch_operands = 0 : i64, tpu.core_type = #tpu.core_type<tc>, window_params = [{transform_indices = @transform_0, window_bounds = array<i64: 1, 8, 32>}, {pipeline_mode = #tpu.pipeline_mode<synchronous>, transform_indices = @transform_1, window_bounds = array<i64: 8, 4>}, {pipeline_mode = #tpu.pipeline_mode<synchronous>, transform_indices = @transform_2, window_bounds = array<i64: 32, 32>}, {pipeline_mode = #tpu.pipeline_mode<synchronous>, transform_indices = @transform_3, window_bounds = array<i64: 1, 32>}, {pipeline_mode = #tpu.pipeline_mode<synchronous>, transform_indices = @transform_4, window_bounds = array<i64: 1, 32>}, {pipeline_mode = #tpu.pipeline_mode<synchronous>, transform_indices = @transform_5, window_bounds = array<i64: 1, 1>}, {transform_indices = @transform_6, window_bounds = array<i64: 1, 1, 4>}]} {
    %c0 = arith.constant 0 : index
    %c0_0 = arith.constant 0 : index
    %c0_1 = arith.constant 0 : index
    %0 = vector.load %arg1[%c0, %c0_0, %c0_1] : memref<1x8x32xf32, #tpu.memory_space<vmem>>, vector<1x8x32xf32>
    %1 = vector.shape_cast %0 : vector<1x8x32xf32> to vector<8x32xf32>
    %c0_2 = arith.constant 0 : index
    %c0_3 = arith.constant 0 : index
    %2 = vector.load %arg3[%c0_2, %c0_3] : memref<32x32xf32, #tpu.memory_space<vmem>>, vector<32x32xf32>
    %cst = arith.constant dense<0.000000e+00> : vector<8x32xf32>
    %3 = tpu.matmul %1, %2, %cst {dimension_numbers = #tpu.dot_dimension_numbers<[1], [0], [0], [1], [0, 0, 1, 1], [], []>} : vector<8x32xf32>, vector<32x32xf32>, vector<8x32xf32> -> vector<8x32xf32>
    %c0_4 = arith.constant 0 : index
    %c0_5 = arith.constant 0 : index
    %4 = vector.load %arg4[%c0_4, %c0_5] : memref<1x32xf32, #tpu.memory_space<vmem>>, vector<1x32xf32>
    %5 = vector.broadcast %4 : vector<1x32xf32> to vector<8x32xf32>
    %6 = arith.addf %3, %5 : vector<8x32xf32>
    %cst_6 = arith.constant 0.000000e+00 : f32
    %7 = vector.broadcast %cst_6 : f32 to vector<8x32xf32>
    %8 = arith.maximumf %6, %7 : vector<8x32xf32>
    %c0_7 = arith.constant 0 : index
    %c0_8 = arith.constant 0 : index
    %9 = vector.load %arg2[%c0_7, %c0_8] : memref<8x4xf32, #tpu.memory_space<vmem>>, vector<8x4xf32>
    %cst_9 = arith.constant dense<0.000000e+00> : vector<4x32xf32>
    %10 = tpu.matmul %9, %8, %cst_9 {dimension_numbers = #tpu.dot_dimension_numbers<[0], [0], [1], [1], [0, 1, 1, 1], [], []>} : vector<8x4xf32>, vector<8x32xf32>, vector<4x32xf32> -> vector<4x32xf32>
    %c0_10 = arith.constant 0 : index
    %c0_11 = arith.constant 0 : index
    %11 = vector.load %arg5[%c0_10, %c0_11] : memref<1x32xf32, #tpu.memory_space<vmem>>, vector<1x32xf32>
    %cst_12 = arith.constant dense<0.000000e+00> : vector<1x4xf32>
    %12 = tpu.matmul %11, %10, %cst_12 {dimension_numbers = #tpu.dot_dimension_numbers<[1], [1], [0], [0], [0, 0, 1, 0], [], []>} : vector<1x32xf32>, vector<4x32xf32>, vector<1x4xf32> -> vector<1x4xf32>
    %cst_13 = arith.constant dense<0.000000e+00> : vector<4xf32>
    %13 = vector.multi_reduction <add>, %9, %cst_13 [0] : vector<8x4xf32> to vector<4xf32>
    %14 = vector.shape_cast %13 : vector<4xf32> to vector<1x4xf32>
    %cst_14 = arith.constant 0.000000e+00 : f32
    %15 = vector.broadcast %cst_14 : f32 to vector<1x4xf32>
    %16 = arith.cmpf ogt, %14, %15 : vector<1x4xf32>
    %17 = tpu.reciprocal %14 {approx = true} : vector<1x4xf32> -> vector<1x4xf32>
    %cst_15 = arith.constant 0.000000e+00 : f32
    %18 = vector.broadcast %cst_15 : f32 to vector<1x4xf32>
    %19 = arith.select %16, %17, %18 : vector<1x4xi1>, vector<1x4xf32>
    %20 = arith.mulf %12, %19 : vector<1x4xf32>
    %c0_16 = arith.constant 0 : index
    %c0_17 = arith.constant 0 : index
    %21 = vector.load %arg6[%c0_16, %c0_17] : memref<1x1xf32, #tpu.memory_space<vmem>>, vector<1x1xf32>
    %22 = vector.broadcast %21 : vector<1x1xf32> to vector<1x4xf32>
    %23 = arith.addf %20, %22 : vector<1x4xf32>
    %24 = arith.negf %23 : vector<1x4xf32>
    %25 = math.exp %24 : vector<1x4xf32>
    %cst_18 = arith.constant 1.000000e+00 : f32
    %26 = vector.broadcast %cst_18 : f32 to vector<1x4xf32>
    %27 = arith.addf %26, %25 : vector<1x4xf32>
    %28 = arith.divf %26, %27 : vector<1x4xf32>
    %c0_19 = arith.constant 0 : index
    %c0_20 = arith.constant 0 : index
    %c0_21 = arith.constant 0 : index
    %29 = vector.load %arg7[%c0_19, %c0_20, %c0_21] : memref<1x1x4xf32, #tpu.memory_space<vmem>>, vector<1x1x4xf32>
    %30 = vector.shape_cast %29 : vector<1x1x4xf32> to vector<1x4xf32>
    %31 = vector.shape_cast %28 : vector<1x4xf32> to vector<1x1x4xf32>
    tpu.vector_store %arg7[%c0_19, %c0_20, %c0_21], %31 {strides = array<i32>} : memref<1x1x4xf32, #tpu.memory_space<vmem>>, vector<1x1x4xf32>,
    return
  }
  func.func @transform_0(%arg0: i32) -> (i32, i32, i32) {
    %c0_i32 = arith.constant 0 : i32
    %c0_i32_0 = arith.constant 0 : i32
    %c0_i32_1 = arith.constant 0 : i32
    return %arg0, %c0_i32, %c0_i32_0 : i32, i32, i32
  }
  func.func @transform_1(%arg0: i32) -> (i32, i32) {
    %c0_i32 = arith.constant 0 : i32
    %c0_i32_0 = arith.constant 0 : i32
    %c0_i32_1 = arith.constant 0 : i32
    return %c0_i32, %c0_i32_0 : i32, i32
  }
  func.func @transform_2(%arg0: i32) -> (i32, i32) {
    %c0_i32 = arith.constant 0 : i32
    %c0_i32_0 = arith.constant 0 : i32
    %c0_i32_1 = arith.constant 0 : i32
    return %c0_i32, %c0_i32_0 : i32, i32
  }
  func.func @transform_3(%arg0: i32) -> (i32, i32) {
    %c0_i32 = arith.constant 0 : i32
    %c0_i32_0 = arith.constant 0 : i32
    %c0_i32_1 = arith.constant 0 : i32
    return %c0_i32, %c0_i32_0 : i32, i32
  }
  func.func @transform_4(%arg0: i32) -> (i32, i32) {
    %c0_i32 = arith.constant 0 : i32
    %c0_i32_0 = arith.constant 0 : i32
    %c0_i32_1 = arith.constant 0 : i32
    return %c0_i32, %c0_i32_0 : i32, i32
  }
  func.func @transform_5(%arg0: i32) -> (i32, i32) {
    %c0_i32 = arith.constant 0 : i32
    %c0_i32_0 = arith.constant 0 : i32
    %c0_i32_1 = arith.constant 0 : i32
    return %c0_i32, %c0_i32_0 : i32, i32
  }
  func.func @transform_6(%arg0: i32) -> (i32, i32, i32) {
    %c0_i32 = arith.constant 0 : i32
    %c0_i32_0 = arith.constant 0 : i32
    %c0_i32_1 = arith.constant 0 : i32
    return %arg0, %c0_i32, %c0_i32_0 : i32, i32, i32
  }
}

</mosaic_0001>

<llo_original>
// kernel: nhp_forward.1
$region0: #{nhp_forward.1}
  #allocation0 [shape = 'u32[]', space=smem, size = 0x4, offset = 0x4, fixed_abs, tag = 'smem constant byte address 0x4 - core index']
  #allocation1 [shape = 'u32[72,128]{1,0:T(1,128)}', space=vmem, size = 0x9000, scoped, tag = 'internal scratch']
  #allocation2 [shape = 'f32[1,1]{1,0:T(1,128)S(1)}', space=vmem, size = 0x200, scoped, tag = 'scoped memory for nhp_forward.1']
  %s0 = inlined_call_operand.vmem [shape: f32[2,8,32], index: 0, kind: input, shape index: {}]
  %s1 = inlined_call_operand.vmem [shape: f32[8,4], index: 1, kind: input, shape index: {}]
  %s2 = inlined_call_operand.vmem [shape: f32[32,32], index: 2, kind: input, shape index: {}]
  %s3 = inlined_call_operand.vmem [shape: f32[1,32], index: 3, kind: input, shape index: {}]
  %s4 = inlined_call_operand.vmem [shape: f32[1,32], index: 4, kind: input, shape index: {}]
  %s5 = inlined_call_operand.<no memory space> [shape: f32[1,1], index: 5, kind: input, shape index: {}]
  %s6 = inlined_call_operand.vmem [shape: f32[2,1,4], index: 6, kind: output, shape index: {}]
  %s7 = sld [smem:[#allocation0]]
  $region57: #{nhp_forward.1} parent=0
    _
  %s9 = ssub.s32 1, %s7
  %s10 = scalar_select 0, %s9, %s7
  %v11 = vstv %s5
  %12 = vst [vmem:[#allocation2] sm:$0x1] %v11
  loop: start=0, step=1, limit=4
  $region2: #{nhp_forward.1} parent=0 // loop_pre_header
    _
  $region3: #{nhp_forward.1} parent=0 // loop_header
    %s14 = sphi 0, %s18
    %p15 = scmp.ge.s32.totalorder %s14, 4
    %s24 = sphi 0, %s26
    %s27 = sphi 0, %s24
    %s28 = sphi 0, %s27
    %s44 = sphi 0, %s28
    %s48 = sphi 0, %s48
    %s50 = sphi 0, %s48
    %s51 = sphi 0, %s50
    %s65 = sphi 0, %s51
    %s69 = sphi 0, %s69
    %s71 = sphi 0, %s69
    %s72 = sphi 0, %s71
    %s86 = sphi 0, %s72
    %s90 = sphi 0, %s90
    %s92 = sphi 0, %s90
    %s93 = sphi 0, %s92
    %s107 = sphi 0, %s93
    %s111 = sphi 0, %s111
    %s113 = sphi 0, %s111
    %s114 = sphi 0, %s113
    %s128 = sphi 0, %s114
    %s132 = sphi 0, %s132
    %s134 = sphi 0, %s132
    %s135 = sphi 0, %s134
    %s149 = sphi 0, %s135
    %s155 = sphi 0, %s157
    %s158 = sphi 0, %s155
    %s159 = sphi 0, %s158
    %s175 = sphi 0, %s159
  $region4: #{nhp_forward.1} parent=0 // loop_header_branch
    %17 = sbr.rel (%p15) target = $region8
  $region5: #{nhp_forward.1} parent=0 // loop_body
    %s19 = ssub.s32 %s14, 1
    %s20 = ssub.s32 %s14, 2
    %s21 = sadd.s32 %s14, 1
    %s22 = ssub.s32 %s14, %s21
    %p23 = scmp.eq.s32.totalorder %s22, 0
    %s25 = sadd.s32 %s24, 1
    %s26 = scalar_select %p23, %s24, %s25
    %p29 = pneg %p23
    %p30 = scmp.eq.s32.totalorder %s14, 1
    %p31 = por %p29, %p30
    %p32 = scmp.ne.s32.totalorder %s24, %s27
    %p33 = scmp.eq.s32.totalorder %s14, 0
    %p34 = por %p32, %p33
    %p35 = scmp.ne.s32.totalorder %s24, %s27
    %p36 = scmp.eq.s32.totalorder %s19, 1
    %p37 = por %p35, %p36
    %p38 = scmp.ne.s32.totalorder %s27, %s28
    %p39 = scmp.eq.s32.totalorder %s19, 0
    %p40 = por %p38, %p39
    %p41 = scmp.ne.s32.totalorder %s27, %s28
    %p42 = scmp.eq.s32.totalorder %s20, 1
    %p43 = por %p41, %p42
    %p45 = scmp.ne.s32.totalorder %s28, %s44
    %p46 = scmp.eq.s32.totalorder %s20, 0
    %p47 = por %p45, %p46
    %s49 = sadd.s32 %s48, 1
    %p52 = scmp.eq.s32.totalorder %s14, 1
    %p53 = scmp.ne.s32.totalorder %s48, %s50
    %p54 = scmp.eq.s32.totalorder %s14, 0
    %p55 = por %p53, %p54
    %p56 = scmp.ne.s32.totalorder %s48, %s50
    %p57 = scmp.eq.s32.totalorder %s19, 1
    %p58 = por %p56, %p57
    %p59 = scmp.ne.s32.totalorder %s50, %s51
    %p60 = scmp.eq.s32.totalorder %s19, 0
    %p61 = por %p59, %p60
    %p62 = scmp.ne.s32.totalorder %s50, %s51
    %p63 = scmp.eq.s32.totalorder %s20, 1
    %p64 = por %p62, %p63
    %p66 = scmp.ne.s32.totalorder %s51, %s65
    %p67 = scmp.eq.s32.totalorder %s20, 0
    %p68 = por %p66, %p67
    %s70 = sadd.s32 %s69, 1
    %p73 = scmp.eq.s32.totalorder %s14, 1
    %p74 = scmp.ne.s32.totalorder %s69, %s71
    %p75 = scmp.eq.s32.totalorder %s14, 0
    %p76 = por %p74, %p75
    %p77 = scmp.ne.s32.totalorder %s69, %s71
    %p78 = scmp.eq.s32.totalorder %s19, 1
    %p79 = por %p77, %p78
    %p80 = scmp.ne.s32.totalorder %s71, %s72
    %p81 = scmp.eq.s32.totalorder %s19, 0
    %p82 = por %p80, %p81
    %p83 = scmp.ne.s32.totalorder %s71, %s72
    %p84 = scmp.eq.s32.totalorder %s20, 1
    %p85 = por %p83, %p84
    %p87 = scmp.ne.s32.totalorder %s72, %s86
    %p88 = scmp.eq.s32.totalorder %s20, 0
    %p89 = por %p87, %p88
    %s91 = sadd.s32 %s90, 1
    %p94 = scmp.eq.s32.totalorder %s14, 1
    %p95 = scmp.ne.s32.totalorder %s90, %s92
    %p96 = scmp.eq.s32.totalorder %s14, 0
    %p97 = por %p95, %p96
    %p98 = scmp.ne.s32.totalorder %s90, %s92
    %p99 = scmp.eq.s32.totalorder %s19, 1
    %p100 = por %p98, %p99
    %p101 = scmp.ne.s32.totalorder %s92, %s93
    %p102 = scmp.eq.s32.totalorder %s19, 0
    %p103 = por %p101, %p102
    %p104 = scmp.ne.s32.totalorder %s92, %s93
    %p105 = scmp.eq.s32.totalorder %s20, 1
    %p106 = por %p104, %p105
    %p108 = scmp.ne.s32.totalorder %s93, %s107
    %p109 = scmp.eq.s32.totalorder %s20, 0
    %p110 = por %p108, %p109
    %s112 = sadd.s32 %s111, 1
    %p115 = scmp.eq.s32.totalorder %s14, 1
    %p116 = scmp.ne.s32.totalorder %s111, %s113
    %p117 = scmp.eq.s32.totalorder %s14, 0
    %p118 = por %p116, %p117
    %p119 = scmp.ne.s32.totalorder %s111, %s113
    %p120 = scmp.eq.s32.totalorder %s19, 1
    %p121 = por %p119, %p120
    %p122 = scmp.ne.s32.totalorder %s113, %s114
    %p123 = scmp.eq.s32.totalorder %s19, 0
    %p124 = por %p122, %p123
    %p125 = scmp.ne.s32.totalorder %s113, %s114
    %p126 = scmp.eq.s32.totalorder %s20, 1
    %p127 = por %p125, %p126
    %p129 = scmp.ne.s32.totalorder %s114, %s128
    %p130 = scmp.eq.s32.totalorder %s20, 0
    %p131 = por %p129, %p130
    %s133 = sadd.s32 %s132, 1
    %p136 = scmp.eq.s32.totalorder %s14, 1
    %p137 = scmp.ne.s32.totalorder %s132, %s134
    %p138 = scmp.eq.s32.totalorder %s14, 0
    %p139 = por %p137, %p138
    %p140 = scmp.ne.s32.totalorder %s132, %s134
    %p141 = scmp.eq.s32.totalorder %s19, 1
    %p142 = por %p140, %p141
    %p143 = scmp.ne.s32.totalorder %s134, %s135
    %p144 = scmp.eq.s32.totalorder %s19, 0
    %p145 = por %p143, %p144
    %p146 = scmp.ne.s32.totalorder %s134, %s135
    %p147 = scmp.eq.s32.totalorder %s20, 1
    %p148 = por %p146, %p147
    %p150 = scmp.ne.s32.totalorder %s135, %s149
    %p151 = scmp.eq.s32.totalorder %s20, 0
    %p152 = por %p150, %p151
    %s153 = ssub.s32 %s14, %s21
    %p154 = scmp.eq.s32.totalorder %s153, 0
    %s156 = sadd.s32 %s155, 1
    %s157 = scalar_select %p154, %s155, %s156
    %p160 = pneg %p154
    %p161 = scmp.eq.s32.totalorder %s14, 1
    %p162 = por %p160, %p161
    %p163 = scmp.ne.s32.totalorder %s155, %s158
    %p164 = scmp.eq.s32.totalorder %s14, 0
    %p165 = por %p163, %p164
    %p166 = scmp.ne.s32.totalorder %s155, %s158
    %p167 = scmp.eq.s32.totalorder %s19, 1
    %p168 = por %p166, %p167
    %p169 = scmp.ne.s32.totalorder %s158, %s159
    %p170 = scmp.eq.s32.totalorder %s19, 0
    %p171 = por %p169, %p170
    %p172 = scmp.ne.s32.totalorder %s158, %s159
    %p173 = scmp.eq.s32.totalorder %s20, 1
    %p174 = por %p172, %p173
    %p176 = scmp.ne.s32.totalorder %s159, %s175
    %p177 = scmp.eq.s32.totalorder %s20, 0
    %p178 = por %p176, %p177
    %p179 = scmp.le.s32.totalorder 1, %s14
    %p180 = scmp.lt.s32.totalorder %s14, 3
    %p181 = pnand %p179, %p180
    %p182 = pneg %p181
    // Predicated region
    $region9: #{nhp_forward.1} parent=5 // pred_check
      _
    $region10: #{nhp_forward.1} parent=5 // pred_check_branch
      %184 = sbr.rel (%p181) target = $region12
    $region11: #{nhp_forward.1} parent=5 // pred_region
      %s185 = ssub.s32 %s14, 1
      // Predicated region
      $region13: #{nhp_forward.1} parent=11 // pred_check
        %p186 = pneg %p61
      $region14: #{nhp_forward.1} parent=11 // pred_check_branch
        %188 = sbr.rel (%p186) target = $region16
      $region15: #{nhp_forward.1} parent=11 // pred_region
        _
      $region16: #{nhp_forward.1} parent=11 // pred_fallthru
        _
      // Predicated region
      $region17: #{nhp_forward.1} parent=11 // pred_check
        %p189 = pneg %p82
      $region18: #{nhp_forward.1} parent=11 // pred_check_branch
        %191 = sbr.rel (%p189) target = $region20
      $region19: #{nhp_forward.1} parent=11 // pred_region
        _
      $region20: #{nhp_forward.1} parent=11 // pred_fallthru
        _
      // Predicated region
      $region21: #{nhp_forward.1} parent=11 // pred_check
        %p192 = pneg %p103
      $region22: #{nhp_forward.1} parent=11 // pred_check_branch
        %194 = sbr.rel (%p192) target = $region24
      $region23: #{nhp_forward.1} parent=11 // pred_region
        _
      $region24: #{nhp_forward.1} parent=11 // pred_fallthru
        _
      // Predicated region
      $region25: #{nhp_forward.1} parent=11 // pred_check
        %p195 = pneg %p124
      $region26: #{nhp_forward.1} parent=11 // pred_check_branch
        %197 = sbr.rel (%p195) target = $region28
      $region27: #{nhp_forward.1} parent=11 // pred_region
        _
      $region28: #{nhp_forward.1} parent=11 // pred_fallthru
        _
      // Predicated region
      $region29: #{nhp_forward.1} parent=11 // pred_check
        %p198 = pneg %p145
      $region30: #{nhp_forward.1} parent=11 // pred_check_branch
        %200 = sbr.rel (%p198) target = $region32
      $region31: #{nhp_forward.1} parent=11 // pred_region
        _
      $region32: #{nhp_forward.1} parent=11 // pred_fallthru
        _
    $region12: #{nhp_forward.1} parent=5 // pred_fallthru
      _
    %p201 = scmp.lt.s32.totalorder %s14, 2
    // Predicated region
    $region33: #{nhp_forward.1} parent=5 // pred_check
      %p202 = pneg %p201
    $region34: #{nhp_forward.1} parent=5 // pred_check_branch
      %204 = sbr.rel (%p202) target = $region36
    $region35: #{nhp_forward.1} parent=5 // pred_region
      // Predicated region
      $region37: #{nhp_forward.1} parent=35 // pred_check
        %p205 = pneg %p34
      $region38: #{nhp_forward.1} parent=35 // pred_check_branch
        %207 = sbr.rel (%p205) target = $region40
      $region39: #{nhp_forward.1} parent=35 // pred_region
        %p208 = scmp.lt.s32.totalorder %s14, 1
        %s209 = scalar_select %p208, %s14, 1
        %s210 = smul.addr %s209, 8
        %s211 = scalar_lea.vmem %s0, %s210
      $region40: #{nhp_forward.1} parent=35 // pred_fallthru
        _
    $region36: #{nhp_forward.1} parent=5 // pred_fallthru
      _
    %p212 = scmp.le.s32.totalorder 1, %s14
    %p213 = scmp.lt.s32.totalorder %s14, 3
    %p214 = pnand %p212, %p213
    %p215 = pneg %p214
    // Predicated region
    $region41: #{nhp_forward.1} parent=5 // pred_check
      _
    $region42: #{nhp_forward.1} parent=5 // pred_check_branch
      %217 = sbr.rel (%p214) target = $region44
    $region43: #{nhp_forward.1} parent=5 // pred_region
      %s218 = ssub.s32 %s14, 1
      %p219 = scmp.lt.s32.totalorder %s19, 1
      %s220 = scalar_select %p219, %s19, 1
      %s221 = smul.addr %s220, 8
      %s222 = scalar_lea.vmem %s0, %s221
      %p223 = pneg %p40
      %p224 = pneg %p37
      %p225 = pneg %p61
      %p226 = pneg %p58
      %p227 = pneg %p82
      %p228 = pneg %p79
      %p229 = pneg %p103
      %p230 = pneg %p100
      %p231 = pneg %p124
      %p232 = pneg %p121
      %p233 = pneg %p145
      %p234 = pneg %p142
      %p235 = pneg %p171
      %p236 = pneg %p168
      %p237 = scmp.lt.s32.totalorder %s19, 1
      %s238 = scalar_select %p237, %s19, 1
      %s239 = scalar_lea.vmem %s6, %s238
      %p240 = scmp.lt.s32.totalorder %s19, 1
      %s241 = scalar_select %p240, %s19, 1
      %s242 = smul.addr %s241, 8
      %s243 = scalar_lea.vmem %s0, %s242
      %p244 = scmp.lt.s32.totalorder %s19, 1
      %s245 = scalar_select %p244, %s19, 1
      %s246 = scalar_lea.vmem %s6, %s245
      %v247 = vld [vmem:[%s243] sm:$0xff]
      %v248 = vld [vmem:[%s2] sm:$0xff]
      %v249 = vld [vmem:[%s2 + $0x8] sm:$0xff]
      %v250 = vld [vmem:[%s2 + $0x10] sm:$0xff]
      %v251 = vld [vmem:[%s2 + $0x18] sm:$0xff]
      %v252 = vld [vmem:[%s3] sm:$0x1]
      %v254 = vperm.slane %v252, 0
      %vm256 = vcmask 261120
      %v258 = vsel %vm256, %v247, 0
      %260 = vmatpush.msra.mxu0 0.0
      %261 = vmatpush.msra.mxu0 0.0
      %262 = vmatpush.msra.mxu0 0.0
      %263 = vmatpush.msra.mxu0 0.0
      %264 = vmatpush.msra.mxu0 0.0
      %265 = vmatpush.msra.mxu0 0.0
      %266 = vmatpush.msra.mxu0 0.0
      %267 = vmatpush.msra.mxu0 0.0
      %268 = vmatpush.msra.mxu0 0.0
      %269 = vmatpush.msra.mxu0 0.0
      %270 = vmatpush.msra.mxu0 0.0
      %271 = vmatpush.msra.mxu0 0.0
      %272 = vmatpush.msra.mxu0 %v251
      %273 = vmatpush.msra.mxu0 %v250
      %274 = vmatpush.msra.mxu0 %v249
      %275 = vmatpush.msra.mxu0 %v248
      %276 = vmatmul.f32.gmra.mxu0 %v258
      %v277 = vpop.f32.mrf.mxu0
      %v278 = vadd.f32 %v254, %v277
      %279 = vdwg.mxu0
      %v280 = vmax.f32 %v278, 0.0
      %v281 = vld [vmem:[%s1] sm:$0xff]
      %282 = vxpose.xlu0.b32.start [1/16] %v281, 128
      %283 = vxpose.xlu0.b32.cont [2/16] 0.0, 128
      %284 = vxpose.xlu0.b32.cont [3/16] 0.0, 128
      %285 = vxpose.xlu0.b32.cont [4/16] 0.0, 128
      %286 = vxpose.xlu0.b32.cont [5/16] 0.0, 128
      %287 = vxpose.xlu0.b32.cont [6/16] 0.0, 128
      %288 = vxpose.xlu0.b32.cont [7/16] 0.0, 128
      %289 = vxpose.xlu0.b32.cont [8/16] 0.0, 128
      %290 = vxpose.xlu0.b32.cont [9/16] 0.0, 128
      %291 = vxpose.xlu0.b32.cont [10/16] 0.0, 128
      %292 = vxpose.xlu0.b32.cont [11/16] 0.0, 128
      %293 = vxpose.xlu0.b32.cont [12/16] 0.0, 128
      %294 = vxpose.xlu0.b32.cont [13/16] 0.0, 128
      %295 = vxpose.xlu0.b32.cont [14/16] 0.0, 128
      %296 = vxpose.xlu0.b32.cont [15/16] 0.0, 128
      %297 = vxpose.xlu0.b32.end [16/16] 0.0, 128
      %v298 = vpop.trf.xlu0
      %v299 = vpop.trf.xlu0
      %v300 = vpop.trf.xlu0
      %v301 = vpop.trf.xlu0
      %v302 = vpop.trf.xlu0
      %v303 = vpop.trf.xlu0
      %v304 = vpop.trf.xlu0
      %v305 = vpop.trf.xlu0
      %v306 = vpop.trf.xlu0
      %v307 = vpop.trf.xlu0
      %v308 = vpop.trf.xlu0
      %v309 = vpop.trf.xlu0
      %v310 = vpop.trf.xlu0
      %v311 = vpop.trf.xlu0
      %v312 = vpop.trf.xlu0
      %v313 = vpop.trf.xlu0
      %vm314 = vcmask 64512
      %v316 = vsel %vm314, %v298, 0
      %318 = vmatpush.msra.mxu0 0.0
      %319 = vmatpush.msra.mxu0 0.0
      %320 = vmatpush.msra.mxu0 0.0
      %321 = vmatpush.msra.mxu0 0.0
      %322 = vmatpush.msra.mxu0 0.0
      %323 = vmatpush.msra.mxu0 0.0
      %324 = vmatpush.msra.mxu0 0.0
      %325 = vmatpush.msra.mxu0 0.0
      %326 = vmatpush.msra.mxu0 0.0
      %327 = vmatpush.msra.mxu0 0.0
      %328 = vmatpush.msra.mxu0 0.0
      %329 = vmatpush.msra.mxu0 0.0
      %330 = vmatpush.msra.mxu0 0.0
      %331 = vmatpush.msra.mxu0 0.0
      %332 = vmatpush.msra.mxu0 0.0
      %333 = vmatpush.msra.mxu0 %v280
      %334 = vmatmul.f32.gmra.mxu0 %v316
      %v335 = vpop.f32.mrf.mxu0
      %v336 = vadd.f32 0.0, %v335
      %337 = vdwg.mxu0
      %v338 = vld [vmem:[%s4] sm:$0x1]
      %v340 = vsel %vm256, %v338, 0
      %v343 = vsel %vm256, %v336, 0
      %345 = vmatpush.xpose.msra.mxu0 0.0
      %346 = vmatpush.xpose.msra.mxu0 0.0
      %347 = vmatpush.xpose.msra.mxu0 0.0
      %348 = vmatpush.xpose.msra.mxu0 0.0
      %349 = vmatpush.xpose.msra.mxu0 0.0
      %350 = vmatpush.xpose.msra.mxu0 0.0
      %351 = vmatpush.xpose.msra.mxu0 0.0
      %352 = vmatpush.xpose.msra.mxu0 0.0
      %353 = vmatpush.xpose.msra.mxu0 0.0
      %354 = vmatpush.xpose.msra.mxu0 0.0
      %355 = vmatpush.xpose.msra.mxu0 0.0
      %356 = vmatpush.xpose.msra.mxu0 0.0
      %357 = vmatpush.xpose.msra.mxu0 0.0
      %358 = vmatpush.xpose.msra.mxu0 0.0
      %359 = vmatpush.xpose.msra.mxu0 0.0
      %360 = vmatpush.xpose.msra.mxu0 %v343
      %361 = vmatmul.f32.gmra.mxu0 %v340
      %v362 = vpop.f32.mrf.mxu0
      %v363 = vadd.f32 0.0, %v362
      %364 = vdwg.mxu0
      %vm365 = vcmask 31744
      %v366 = vsel %vm365, %v281, 0.0
      %v367 = vrot.slane %v366, 4
      %v368 = vadd.f32 %v366, %v367
      %v369 = vrot.slane %v368, 2
      %v370 = vadd.f32 %v368, %v369
      %v371 = vrot.slane %v370, 1
      %v372 = vadd.f32 %v370, %v371
      %vm373 = vcmp.gt.f32.partialorder %v372, 0.0
      %v374 = vrcp.pop %v372
      %v375 = vsel %vm373, %v374, 0.0
      %v376 = vmul.f32 %v363, %v375
      %v377 = vld [vmem:[#allocation2] sm:$0x1]
      %379 = vset.pattern.permute.xlu0 0
      %380 = vperm.xlu0 %379, %v377
      %v381 = vpop.permute.xlu0 %380
      %v383 = vperm.slane %v381, 0
      %v384 = vadd.f32 %v376, %v383
      %v385 = vxor.u32 %v384, 2147483648
      %v386 = vmul.f32 %v385, 1.442695
      %v387 = vpow.pop %v386
      %v388 = vadd.f32 %v387, 1.0
      %v389 = vrcp.pop %v388
      %v390 = vmul.f32 %v388, %v389
      %v391 = vsub.f32 1.0, %v390
      %v392 = vmul.f32 %v389, %v391
      %v393 = vadd.f32 %v389, %v392
      %vm394 = vweird.f32 %v388
      %vm395 = vweird.f32 %v389
      %vm396 = vmor %vm394, %vm395
      %v397 = vsel %vm396, %v389, %v393
      %v398 = vand.u32 2147483647, %v388
      %vm399 = vcmp.eq.f32.partialorder %v398, 8.507059e+37
      %v400 = vand.u32 %v388, 2147483648
      %v401 = vor.u32 1.1754944e-38, %v400
      %v402 = vsel %vm399, %v401, %v397
      %v403 = vmul.f32 1.0, %v402
      %vm404 = vcmask 24576
      %405 = vst.msk [vmem:[%s246] sm:$0x1] %vm404, %v403
      %p406 = scmp.lt.s32.totalorder %s19, 1
      %s407 = scalar_select %p406, %s19, 1
      %s408 = scalar_lea.vmem %s6, %s407
      // Predicated region
      $region45: #{nhp_forward.1} parent=43 // pred_check
        %p409 = pneg %p168
      $region46: #{nhp_forward.1} parent=43 // pred_check_branch
        %411 = sbr.rel (%p409) target = $region48
      $region47: #{nhp_forward.1} parent=43 // pred_region
        _
      $region48: #{nhp_forward.1} parent=43 // pred_fallthru
        _
    $region44: #{nhp_forward.1} parent=5 // pred_fallthru
      _
    %p412 = scmp.le.s32.totalorder 2, %s14
    // Predicated region
    $region49: #{nhp_forward.1} parent=5 // pred_check
      %p413 = pneg %p412
    $region50: #{nhp_forward.1} parent=5 // pred_check_branch
      %415 = sbr.rel (%p413) target = $region52
    $region51: #{nhp_forward.1} parent=5 // pred_region
      %s416 = ssub.s32 %s14, 2
      // Predicated region
      $region53: #{nhp_forward.1} parent=51 // pred_check
        %p417 = pneg %p174
      $region54: #{nhp_forward.1} parent=51 // pred_check_branch
        %419 = sbr.rel (%p417) target = $region56
      $region55: #{nhp_forward.1} parent=51 // pred_region
        %p420 = scmp.lt.s32.totalorder %s20, 1
        %s421 = scalar_select %p420, %s20, 1
        %s422 = scalar_lea.vmem %s6, %s421
      $region56: #{nhp_forward.1} parent=51 // pred_fallthru
        _
    $region52: #{nhp_forward.1} parent=5 // pred_fallthru
      _
  $region6: #{nhp_forward.1} parent=0 // loop_footer
    %s18 = sadd.s32 1, %s14
  $region7: #{nhp_forward.1} parent=0 // loop_footer_branch
    %13 = sbr.rel target = $region3
  $region8: #{nhp_forward.1} parent=0 // loop_exit
    _

</llo_original>
